<compile_context>
chip_gen: v5e
topology: v5e:2x2
jax: 0.10.0
libtpu: 0.0.40
codegen_flags: <defaults>
</compile_context>

<pallas_src>
import jax
import jax.numpy as jnp
from jax.experimental import pallas as pl
from jax.experimental.pallas import tpu as pltpu

LANE = 128
SUBLANE = 8


# ----------------------------- kernel ---------------------------------------
def mlp_kernel(x_ref, w1_ref, b1_ref, w2_ref, b2_ref, w3_ref, b3_ref, o_ref):
    # x arrives in its original dtype (f32); cast on the VPU (plenty of slack at
    # these sizes) right before the first MXU pass.
    x = x_ref[...].astype(w1_ref.dtype)
    # l1 + relu (f32 accumulate, f32 bias/relu)
    h = jnp.dot(x, w1_ref[...], preferred_element_type=jnp.float32)
    h = jnp.maximum(h + b1_ref[...], 0.0)
    # l2 + relu
    h = jnp.dot(h.astype(w2_ref.dtype), w2_ref[...],
                preferred_element_type=jnp.float32)
    h = jnp.maximum(h + b2_ref[...], 0.0)
    # l3 (no activation)
    out = jnp.dot(h.astype(w3_ref.dtype), w3_ref[...],
                  preferred_element_type=jnp.float32)
    o_ref[...] = (out + b3_ref[...]).astype(o_ref.dtype)


# ----------------------------- helpers ---------------------------------------
def _round_up(v, m):
    return (v + m - 1) // m * m


def _pad_last(a, target):
    pad = target - a.shape[-1]
    if pad == 0:
        return a
    widths = [(0, 0)] * (a.ndim - 1) + [(0, pad)]
    return jnp.pad(a, widths)


def _pad2(a, rows, cols):
    return jnp.pad(a, ((0, rows - a.shape[0]), (0, cols - a.shape[1])))


def _num_tensorcores():
    # v7x has 2 TensorCores per chip; v5e/v6e have 1. Grid steps are a serial
    # loop on a single TC, so only split the batch when there are 2 cores.
    try:
        kind = jax.devices()[0].device_kind.lower()
        if "v7" in kind:
            return 2
    except Exception:  # pragma: no cover - defensive, e.g. CPU interpret mode
        pass
    return 1


def _pick_tile_m(M, num_tc, max_tile=2048):
    if num_tc >= 2 and M >= 2 * SUBLANE:
        # Keep >=2 grid steps so megacore "parallel" can shard the batch axis.
        tile = min(_round_up(pl.cdiv(M, 2), SUBLANE), 1024)
    else:
        # Single TC: one big tile (whole batch resident) avoids per-step overhead.
        tile = min(_round_up(M, SUBLANE), max_tile)
    return tile


def _compute_vmem_limit(tile_m, d_in, hp, cp, weight_bytes):
    io_bytes = 2 * tile_m * (d_in + cp) * 4     # double-buffered x tile + out tile
    w_bytes = 2 * weight_bytes                  # default double-buffered resident blocks
    act_bytes = 3 * tile_m * hp * 4             # f32 intermediates inside the body
    total = io_bytes + w_bytes + act_bytes + (4 << 20)   # headroom for temporaries
    # Clamp: at least 8 MiB, never above v7x's 64 MiB physical VMEM (48 MiB cap).
    return int(min(max(total, 8 << 20), 48 << 20))


# ----------------------------- parameter prep --------------------------------
def prepare_params(params, compute_dtype=jnp.bfloat16):
    """One-time padding/cast of the Linear weights (stored as (in, out)) and biases.

    Hidden/class feature axes are padded to multiples of 128 lanes; the input
    feature axis is left un-padded because x is loaded raw by the kernel.
    """
    w1, b1, w2, b2, w3, b3 = params
    d_in, h = w1.shape
    c = w3.shape[1]
    hp = _round_up(h, LANE)
    cp = _round_up(c, LANE)

    w1_p = _pad2(w1, d_in, hp).astype(compute_dtype)
    w2_p = _pad2(w2, hp, hp).astype(compute_dtype)
    w3_p = _pad2(w3, hp, cp).astype(compute_dtype)
    b1_p = _pad_last(b1.reshape(1, -1), hp).astype(jnp.float32)
    b2_p = _pad_last(b2.reshape(1, -1), hp).astype(jnp.float32)
    b3_p = _pad_last(b3.reshape(1, -1), cp).astype(jnp.float32)

    meta = dict(D_in=d_in, H=h, C=c, Hp=hp, Cp=cp)
    return (w1_p, b1_p, w2_p, b2_p, w3_p, b3_p), meta


# ----------------------------- forward ---------------------------------------
def reference_forward(x, params):
    w1, b1, w2, b2, w3, b3 = params
    h = jnp.maximum(x @ w1 + b1, 0.0)
    h = jnp.maximum(h @ w2 + b2, 0.0)
    return h @ w3 + b3


def neural_net_forward(x, prepared, meta, *, tile_m=None, min_pallas_batch=256):
    """Fused MLP forward matching torch NeuralNet.forward semantics.

    x: (M, D_in) float32. prepared/meta come from prepare_params().
    Returns (M, num_classes) float32.
    """
    w1_p, b1_p, w2_p, b2_p, w3_p, b3_p = prepared
    d_in, hp, cp, c = meta["D_in"], meta["Hp"], meta["Cp"], meta["C"]
    M = x.shape[0]
    assert x.shape[1] == d_in

    # At tiny batch the custom call is pure overhead -> let XLA fuse the dots
    # using the same preprocessed (padded, cast) weights.
    if M < min_pallas_batch:
        xc = x.astype(w1_p.dtype)
        h = jnp.maximum(
            jnp.dot(xc, w1_p, preferred_element_type=jnp.float32) + b1_p, 0.0)
        h = jnp.maximum(
            jnp.dot(h.astype(w2_p.dtype), w2_p,
                    preferred_element_type=jnp.float32) + b2_p, 0.0)
        out = jnp.dot(h.astype(w3_p.dtype), w3_p,
                      preferred_element_type=jnp.float32) + b3_p
        return out[:, :c]

    num_tc = _num_tensorcores()
    if tile_m is None:
        tile_m = _pick_tile_m(M, num_tc)
    tile_m = _round_up(tile_m, SUBLANE)

    # Handle awkward batch sizes by padding M up to a whole number of tiles
    # (few grid steps) instead of shrinking the tile.
    Mp = _round_up(M, tile_m)
    x_in = x if Mp == M else jnp.pad(x, ((0, Mp - M), (0, 0)))
    grid = (Mp // tile_m,)

    weight_bytes = sum(int(a.size) * a.dtype.itemsize
                       for a in (w1_p, b1_p, w2_p, b2_p, w3_p, b3_p))
    vmem_limit = _compute_vmem_limit(tile_m, d_in, hp, cp, weight_bytes)

    # Resident weight blocks: single-buffer them only if they are big enough for
    # double-buffering to matter on v7x's 64 MiB VMEM (not at kmitbot sizes).
    weight_pipeline = {}
    if weight_bytes > (4 << 20):
        weight_pipeline = dict(pipeline_mode=pl.Buffered(1))

    flops = 2 * Mp * (d_in * hp + hp * hp + hp * cp)
    bytes_accessed = int(x_in.size * x_in.dtype.itemsize
                         + weight_bytes + Mp * cp * 4)

    out_p = pl.pallas_call(
        mlp_kernel,
        out_shape=jax.ShapeDtypeStruct((Mp, cp), jnp.float32),
        grid_spec=pltpu.PrefetchScalarGridSpec(
            num_scalar_prefetch=0,
            grid=grid,
            in_specs=[
                pl.BlockSpec((tile_m, d_in), lambda i: (i, 0)),          # x tile (raw f32)
                pl.BlockSpec((d_in, hp), lambda i: (0, 0), **weight_pipeline),  # W1 (in,out)
                pl.BlockSpec((1, hp), lambda i: (0, 0), **weight_pipeline),     # b1
                pl.BlockSpec((hp, hp), lambda i: (0, 0), **weight_pipeline),    # W2
                pl.BlockSpec((1, hp), lambda i: (0, 0), **weight_pipeline),     # b2
                pl.BlockSpec((hp, cp), lambda i: (0, 0), **weight_pipeline),    # W3
                pl.BlockSpec((1, cp), lambda i: (0, 0), **weight_pipeline),     # b3
            ],
            out_specs=pl.BlockSpec((tile_m, cp), lambda i: (i, 0)),
        ),
        compiler_params=pltpu.CompilerParams(
            dimension_semantics=("parallel",),
            vmem_limit_bytes=vmem_limit,
        ),
        cost_estimate=pl.CostEstimate(
            flops=flops, transcendentals=0, bytes_accessed=bytes_accessed),
    )(x_in, w1_p, b1_p, w2_p, b2_p, w3_p, b3_p)

    # TODO(synk): if the consumer tolerates padded logits / bf16, return out_p
    # directly (or store bf16 in the kernel epilogue) to skip this slice pass.
    return out_p[:M, :c]


# ----------------------------- init ------------------------------------------
def init_params(key, input_size, hidden_size, num_classes):
    """Deterministic init mimicking nn.Linear's U(-1/sqrt(fan_in), 1/sqrt(fan_in))."""
    ks = jax.random.split(key, 6)

    def linear(kw, kb, fan_in, fan_out):
        bound = 1.0 / jnp.sqrt(fan_in)
        # stored as (in, out): torch weight (out, in) transposed
        w = jax.random.uniform(kw, (fan_in, fan_out), jnp.float32, -bound, bound)
        b = jax.random.uniform(kb, (1, fan_out), jnp.float32, -bound, bound)
        return w, b

    w1, b1 = linear(ks[0], ks[1], input_size, hidden_size)
    w2, b2 = linear(ks[2], ks[3], hidden_size, hidden_size)
    w3, b3 = linear(ks[4], ks[5], hidden_size, num_classes)
    return (w1, b1, w2, b2, w3, b3)


if __name__ == "__main__":
    # Bag-of-words chatbot classifier shapes.
    batch = 256
    input_size = 64
    hidden_size = 32
    num_classes = 16

    key = jax.random.PRNGKey(0)
    k_x, k_p = jax.random.split(key)
    x = jax.random.normal(k_x, (batch, input_size), jnp.float32)
    params = init_params(k_p, input_size, hidden_size, num_classes)

    ref = reference_forward(x, params)

    # f32 compute path: strict numerical check against the pure-JAX reference.
    prep_f32, meta = prepare_params(params, compute_dtype=jnp.float32)
    out_f32 = jax.block_until_ready(
        neural_net_forward(x, prep_f32, meta, min_pallas_batch=1))
    assert out_f32.shape == (batch, num_classes)
    assert jnp.allclose(out_f32, ref, atol=1e-4, rtol=1e-4)

    # bf16 compute path (default; MXU-native on v6e/v7x): looser tolerance.
    prep_bf16, _ = prepare_params(params, compute_dtype=jnp.bfloat16)
    out_bf16 = jax.block_until_ready(
        neural_net_forward(x, prep_bf16, meta, min_pallas_batch=1))
    assert out_bf16.shape == (batch, num_classes)
    assert jnp.allclose(out_bf16, ref, atol=5e-2, rtol=5e-2)

    # Awkward batch size (no big power-of-two divisor) exercises cdiv + row padding.
    x_odd = x[:200]
    out_odd = jax.block_until_ready(
        neural_net_forward(x_odd, prep_f32, meta, min_pallas_batch=1))
    assert out_odd.shape == (200, num_classes)
    assert jnp.allclose(out_odd, ref[:200], atol=1e-4, rtol=1e-4)

    print("KERNEL_OK")
</pallas_src>

<mosaic_0001>
module attributes {stable_mosaic.version = 11 : i64} {
  func.func @mlp_kernel(%arg0: i32, %arg1: memref<256x64xf32, #tpu.memory_space<vmem>>, %arg2: memref<64x128xf32, #tpu.memory_space<vmem>>, %arg3: memref<1x128xf32, #tpu.memory_space<vmem>>, %arg4: memref<128x128xf32, #tpu.memory_space<vmem>>, %arg5: memref<1x128xf32, #tpu.memory_space<vmem>>, %arg6: memref<128x128xf32, #tpu.memory_space<vmem>>, %arg7: memref<1x128xf32, #tpu.memory_space<vmem>>, %arg8: memref<256x128xf32, #tpu.memory_space<vmem>>) attributes {dimension_semantics = [#tpu.dimension_semantics<parallel>], iteration_bounds = array<i64: 1>, scalar_prefetch = 0 : i64, scratch_operands = 0 : i64, tpu.core_type = #tpu.core_type<tc>, window_params = [{transform_indices = @transform_0, window_bounds = array<i64: 256, 64>}, {pipeline_mode = #tpu.pipeline_mode<synchronous>, transform_indices = @transform_1, window_bounds = array<i64: 64, 128>}, {pipeline_mode = #tpu.pipeline_mode<synchronous>, transform_indices = @transform_2, window_bounds = array<i64: 1, 128>}, {pipeline_mode = #tpu.pipeline_mode<synchronous>, transform_indices = @transform_3, window_bounds = array<i64: 128, 128>}, {pipeline_mode = #tpu.pipeline_mode<synchronous>, transform_indices = @transform_4, window_bounds = array<i64: 1, 128>}, {pipeline_mode = #tpu.pipeline_mode<synchronous>, transform_indices = @transform_5, window_bounds = array<i64: 128, 128>}, {pipeline_mode = #tpu.pipeline_mode<synchronous>, transform_indices = @transform_6, window_bounds = array<i64: 1, 128>}, {transform_indices = @transform_7, window_bounds = array<i64: 256, 128>}]} {
    %c0 = arith.constant 0 : index
    %c0_0 = arith.constant 0 : index
    %0 = vector.load %arg1[%c0, %c0_0] : memref<256x64xf32, #tpu.memory_space<vmem>>, vector<256x64xf32>
    %c0_1 = arith.constant 0 : index
    %c0_2 = arith.constant 0 : index
    %1 = vector.load %arg2[%c0_1, %c0_2] : memref<64x128xf32, #tpu.memory_space<vmem>>, vector<64x128xf32>
    %cst = arith.constant dense<0.000000e+00> : vector<256x128xf32>
    %2 = tpu.matmul %0, %1, %cst {dimension_numbers = #tpu.dot_dimension_numbers<[1], [0], [0], [1], [0, 0, 1, 1], [], []>} : vector<256x64xf32>, vector<64x128xf32>, vector<256x128xf32> -> vector<256x128xf32>
    %c0_3 = arith.constant 0 : index
    %c0_4 = arith.constant 0 : index
    %3 = vector.load %arg3[%c0_3, %c0_4] : memref<1x128xf32, #tpu.memory_space<vmem>>, vector<1x128xf32>
    %4 = vector.broadcast %3 : vector<1x128xf32> to vector<256x128xf32>
    %5 = arith.addf %2, %4 : vector<256x128xf32>
    %cst_5 = arith.constant 0.000000e+00 : f32
    %6 = vector.broadcast %cst_5 : f32 to vector<256x128xf32>
    %7 = arith.maximumf %5, %6 : vector<256x128xf32>
    %c0_6 = arith.constant 0 : index
    %c0_7 = arith.constant 0 : index
    %8 = vector.load %arg4[%c0_6, %c0_7] : memref<128x128xf32, #tpu.memory_space<vmem>>, vector<128x128xf32>
    %cst_8 = arith.constant dense<0.000000e+00> : vector<256x128xf32>
    %9 = tpu.matmul %7, %8, %cst_8 {dimension_numbers = #tpu.dot_dimension_numbers<[1], [0], [0], [1], [0, 0, 1, 1], [], []>} : vector<256x128xf32>, vector<128x128xf32>, vector<256x128xf32> -> vector<256x128xf32>
    %c0_9 = arith.constant 0 : index
    %c0_10 = arith.constant 0 : index
    %10 = vector.load %arg5[%c0_9, %c0_10] : memref<1x128xf32, #tpu.memory_space<vmem>>, vector<1x128xf32>
    %11 = vector.broadcast %10 : vector<1x128xf32> to vector<256x128xf32>
    %12 = arith.addf %9, %11 : vector<256x128xf32>
    %cst_11 = arith.constant 0.000000e+00 : f32
    %13 = vector.broadcast %cst_11 : f32 to vector<256x128xf32>
    %14 = arith.maximumf %12, %13 : vector<256x128xf32>
    %c0_12 = arith.constant 0 : index
    %c0_13 = arith.constant 0 : index
    %15 = vector.load %arg6[%c0_12, %c0_13] : memref<128x128xf32, #tpu.memory_space<vmem>>, vector<128x128xf32>
    %cst_14 = arith.constant dense<0.000000e+00> : vector<256x128xf32>
    %16 = tpu.matmul %14, %15, %cst_14 {dimension_numbers = #tpu.dot_dimension_numbers<[1], [0], [0], [1], [0, 0, 1, 1], [], []>} : vector<256x128xf32>, vector<128x128xf32>, vector<256x128xf32> -> vector<256x128xf32>
    %c0_15 = arith.constant 0 : index
    %c0_16 = arith.constant 0 : index
    %17 = vector.load %arg7[%c0_15, %c0_16] : memref<1x128xf32, #tpu.memory_space<vmem>>, vector<1x128xf32>
    %18 = vector.broadcast %17 : vector<1x128xf32> to vector<256x128xf32>
    %19 = arith.addf %16, %18 : vector<256x128xf32>
    %c0_17 = arith.constant 0 : index
    %c0_18 = arith.constant 0 : index
    %20 = vector.load %arg8[%c0_17, %c0_18] : memref<256x128xf32, #tpu.memory_space<vmem>>, vector<256x128xf32>
    tpu.vector_store %arg8[%c0_17, %c0_18], %19 {strides = array<i32>} : memref<256x128xf32, #tpu.memory_space<vmem>>, vector<256x128xf32>,
    return
  }
  func.func @transform_0(%arg0: i32) -> (i32, i32) {
    %c0_i32 = arith.constant 0 : i32
    %c0_i32_0 = arith.constant 0 : i32
    return %arg0, %c0_i32 : i32, i32
  }
  func.func @transform_1(%arg0: i32) -> (i32, i32) {
    %c0_i32 = arith.constant 0 : i32
    %c0_i32_0 = arith.constant 0 : i32
    %c0_i32_1 = arith.constant 0 : i32
    return %c0_i32, %c0_i32_0 : i32, i32
  }
  func.func @transform_2(%arg0: i32) -> (i32, i32) {
    %c0_i32 = arith.constant 0 : i32
    %c0_i32_0 = arith.constant 0 : i32
    %c0_i32_1 = arith.constant 0 : i32
    return %c0_i32, %c0_i32_0 : i32, i32
  }
  func.func @transform_3(%arg0: i32) -> (i32, i32) {
    %c0_i32 = arith.constant 0 : i32
    %c0_i32_0 = arith.constant 0 : i32
    %c0_i32_1 = arith.constant 0 : i32
    return %c0_i32, %c0_i32_0 : i32, i32
  }
  func.func @transform_4(%arg0: i32) -> (i32, i32) {
    %c0_i32 = arith.constant 0 : i32
    %c0_i32_0 = arith.constant 0 : i32
    %c0_i32_1 = arith.constant 0 : i32
    return %c0_i32, %c0_i32_0 : i32, i32
  }
  func.func @transform_5(%arg0: i32) -> (i32, i32) {
    %c0_i32 = arith.constant 0 : i32
    %c0_i32_0 = arith.constant 0 : i32
    %c0_i32_1 = arith.constant 0 : i32
    return %c0_i32, %c0_i32_0 : i32, i32
  }
  func.func @transform_6(%arg0: i32) -> (i32, i32) {
    %c0_i32 = arith.constant 0 : i32
    %c0_i32_0 = arith.constant 0 : i32
    %c0_i32_1 = arith.constant 0 : i32
    return %c0_i32, %c0_i32_0 : i32, i32
  }
  func.func @transform_7(%arg0: i32) -> (i32, i32) {
    %c0_i32 = arith.constant 0 : i32
    %c0_i32_0 = arith.constant 0 : i32
    return %arg0, %c0_i32 : i32, i32
  }
}

</mosaic_0001>

<llo_original>
// kernel: tpu_custom_call.1
$region0: #{tpu_custom_call.1}
  #allocation0 [shape = 'u32[]', space=smem, size = 0x4, offset = 0x4, fixed_abs, tag = 'smem constant byte address 0x4 - core index']
  #allocation1 [shape = 'u32[72,128]{1,0:T(1,128)}', space=vmem, size = 0x9000, scoped, tag = 'internal scratch']
  %s0 = inlined_call_operand.vmem [shape: f32[256,64], index: 0, kind: input, shape index: {}]
  %s1 = inlined_call_operand.vmem [shape: f32[64,128], index: 1, kind: input, shape index: {}]
  %s2 = inlined_call_operand.vmem [shape: f32[1,128], index: 2, kind: input, shape index: {}]
  %s3 = inlined_call_operand.vmem [shape: f32[128,128], index: 3, kind: input, shape index: {}]
  %s4 = inlined_call_operand.vmem [shape: f32[1,128], index: 4, kind: input, shape index: {}]
  %s5 = inlined_call_operand.vmem [shape: f32[128,128], index: 5, kind: input, shape index: {}]
  %s6 = inlined_call_operand.vmem [shape: f32[1,128], index: 6, kind: input, shape index: {}]
  %s7 = inlined_call_operand.hbm [shape: f32[256,128], index: 7, kind: output, shape index: {}]
  %s8 = sld [smem:[#allocation0]]
  $region38: #{tpu_custom_call.1} parent=0
    _
  %s10 = ssub.s32 1, %s8
  %s11 = scalar_select 0, %s10, %s8
  $region1: #{tpu_custom_call.1} parent=0
    #allocation2 [shape = 'u8[131072]{0}', space=vmem, size = 0x20000, scoped, tag = 'output window, operand 0, single buffered']
    #allocation3 [shape = 's32[1]{0}', space=sflag, size = 0x4, scoped, tag = 'scoped memory for tpu_custom_call.1']
    %12 = vsyncpa [#allocation3], 0
    // Predicated region
    $region2: #{tpu_custom_call.1} parent=1 // pred_check
      _
    $region3: #{tpu_custom_call.1} parent=1 // pred_check_branch
      %14 = sbr.rel (0) target = $region5
    $region4: #{tpu_custom_call.1} parent=1 // pred_region
      _
    $region5: #{tpu_custom_call.1} parent=1 // pred_fallthru
      _
    // Predicated region
    $region6: #{tpu_custom_call.1} parent=1 // pred_check
      _
    $region7: #{tpu_custom_call.1} parent=1 // pred_check_branch
      %16 = sbr.rel (0) target = $region9
    $region8: #{tpu_custom_call.1} parent=1 // pred_region
      _
    $region9: #{tpu_custom_call.1} parent=1 // pred_fallthru
      _
    // Predicated region
    $region10: #{tpu_custom_call.1} parent=1 // pred_check
      _
    $region11: #{tpu_custom_call.1} parent=1 // pred_check_branch
      %18 = sbr.rel (0) target = $region13
    $region12: #{tpu_custom_call.1} parent=1 // pred_region
      _
    $region13: #{tpu_custom_call.1} parent=1 // pred_fallthru
      _
    // Predicated region
    $region14: #{tpu_custom_call.1} parent=1 // pred_check
      _
    $region15: #{tpu_custom_call.1} parent=1 // pred_check_branch
      %20 = sbr.rel (0) target = $region17
    $region16: #{tpu_custom_call.1} parent=1 // pred_region
      _
    $region17: #{tpu_custom_call.1} parent=1 // pred_fallthru
      _
    // Predicated region
    $region18: #{tpu_custom_call.1} parent=1 // pred_check
      _
    $region19: #{tpu_custom_call.1} parent=1 // pred_check_branch
      %22 = sbr.rel (0) target = $region21
    $region20: #{tpu_custom_call.1} parent=1 // pred_region
      _
    $region21: #{tpu_custom_call.1} parent=1 // pred_fallthru
      _
    // Predicated region
    $region22: #{tpu_custom_call.1} parent=1 // pred_check
      _
    $region23: #{tpu_custom_call.1} parent=1 // pred_check_branch
      %24 = sbr.rel (0) target = $region25
    $region24: #{tpu_custom_call.1} parent=1 // pred_region
      _
    $region25: #{tpu_custom_call.1} parent=1 // pred_fallthru
      _
    // Predicated region
    $region26: #{tpu_custom_call.1} parent=1 // pred_check
      _
    $region27: #{tpu_custom_call.1} parent=1 // pred_check_branch
      %26 = sbr.rel (0) target = $region29
    $region28: #{tpu_custom_call.1} parent=1 // pred_region
      _
    $region29: #{tpu_custom_call.1} parent=1 // pred_fallthru
      _
    %v27 = vld [vmem:[%s0] sm:$0xff]
    %v28 = vld [vmem:[%s0 + $0x8] sm:$0xff]
    %v29 = vld [vmem:[%s0 + $0x10] sm:$0xff]
    %v30 = vld [vmem:[%s0 + $0x18] sm:$0xff]
    %v31 = vld [vmem:[%s0 + $0x20] sm:$0xff]
    %v32 = vld [vmem:[%s0 + $0x28] sm:$0xff]
    %v33 = vld [vmem:[%s0 + $0x30] sm:$0xff]
    %v34 = vld [vmem:[%s0 + $0x38] sm:$0xff]
    %v35 = vld [vmem:[%s0 + $0x40] sm:$0xff]
    %v36 = vld [vmem:[%s0 + $0x48] sm:$0xff]
    %v37 = vld [vmem:[%s0 + $0x50] sm:$0xff]
    %v38 = vld [vmem:[%s0 + $0x58] sm:$0xff]
    %v39 = vld [vmem:[%s0 + $0x60] sm:$0xff]
    %v40 = vld [vmem:[%s0 + $0x68] sm:$0xff]
    %v41 = vld [vmem:[%s0 + $0x70] sm:$0xff]
    %v42 = vld [vmem:[%s0 + $0x78] sm:$0xff]
    %v43 = vld [vmem:[%s0 + $0x80] sm:$0xff]
    %v44 = vld [vmem:[%s0 + $0x88] sm:$0xff]
    %v45 = vld [vmem:[%s0 + $0x90] sm:$0xff]
    %v46 = vld [vmem:[%s0 + $0x98] sm:$0xff]
    %v47 = vld [vmem:[%s0 + $0xa0] sm:$0xff]
    %v48 = vld [vmem:[%s0 + $0xa8] sm:$0xff]
    %v49 = vld [vmem:[%s0 + $0xb0] sm:$0xff]
    %v50 = vld [vmem:[%s0 + $0xb8] sm:$0xff]
    %v51 = vld [vmem:[%s0 + $0xc0] sm:$0xff]
    %v52 = vld [vmem:[%s0 + $0xc8] sm:$0xff]
    %v53 = vld [vmem:[%s0 + $0xd0] sm:$0xff]
    %v54 = vld [vmem:[%s0 + $0xd8] sm:$0xff]
    %v55 = vld [vmem:[%s0 + $0xe0] sm:$0xff]
    %v56 = vld [vmem:[%s0 + $0xe8] sm:$0xff]
    %v57 = vld [vmem:[%s0 + $0xf0] sm:$0xff]
    %v58 = vld [vmem:[%s0 + $0xf8] sm:$0xff]
    %v59 = vld [vmem:[%s1] sm:$0xff]
    %v60 = vld [vmem:[%s1 + $0x8] sm:$0xff]
    %v61 = vld [vmem:[%s1 + $0x10] sm:$0xff]
    %v62 = vld [vmem:[%s1 + $0x18] sm:$0xff]
    %v63 = vld [vmem:[%s1 + $0x20] sm:$0xff]
    %v64 = vld [vmem:[%s1 + $0x28] sm:$0xff]
    %v65 = vld [vmem:[%s1 + $0x30] sm:$0xff]
    %v66 = vld [vmem:[%s1 + $0x38] sm:$0xff]
    %v67 = vld [vmem:[%s2] sm:$0x1]
    %v69 = vperm.slane %v67, 0
    %vm71 = vcmask 523264
    %v73 = vsel %vm71, %v27, 0
    %v76 = vsel %vm71, %v28, 0
    %v79 = vsel %vm71, %v29, 0
    %v82 = vsel %vm71, %v30, 0
    %v85 = vsel %vm71, %v31, 0
    %v88 = vsel %vm71, %v32, 0
    %v91 = vsel %vm71, %v33, 0
    %v94 = vsel %vm71, %v34, 0
    %v97 = vsel %vm71, %v35, 0
    %v100 = vsel %vm71, %v36, 0
    %v103 = vsel %vm71, %v37, 0
    %v106 = vsel %vm71, %v38, 0
    %v109 = vsel %vm71, %v39, 0
    %v112 = vsel %vm71, %v40, 0
    %v115 = vsel %vm71, %v41, 0
    %v118 = vsel %vm71, %v42, 0
    %v121 = vsel %vm71, %v43, 0
    %v124 = vsel %vm71, %v44, 0
    %v127 = vsel %vm71, %v45, 0
    %v130 = vsel %vm71, %v46, 0
    %v133 = vsel %vm71, %v47, 0
    %v136 = vsel %vm71, %v48, 0
    %v139 = vsel %vm71, %v49, 0
    %v142 = vsel %vm71, %v50, 0
    %v145 = vsel %vm71, %v51, 0
    %v148 = vsel %vm71, %v52, 0
    %v151 = vsel %vm71, %v53, 0
    %v154 = vsel %vm71, %v54, 0
    %v157 = vsel %vm71, %v55, 0
    %v160 = vsel %vm71, %v56, 0
    %v163 = vsel %vm71, %v57, 0
    %v166 = vsel %vm71, %v58, 0
    %168 = vmatpush.msra.mxu0 0.0
    %169 = vmatpush.msra.mxu0 0.0
    %170 = vmatpush.msra.mxu0 0.0
    %171 = vmatpush.msra.mxu0 0.0
    %172 = vmatpush.msra.mxu0 0.0
    %173 = vmatpush.msra.mxu0 0.0
    %174 = vmatpush.msra.mxu0 0.0
    %175 = vmatpush.msra.mxu0 0.0
    %176 = vmatpush.msra.mxu0 %v66
    %177 = vmatpush.msra.mxu0 %v65
    %178 = vmatpush.msra.mxu0 %v64
    %179 = vmatpush.msra.mxu0 %v63
    %180 = vmatpush.msra.mxu0 %v62
    %181 = vmatpush.msra.mxu0 %v61
    %182 = vmatpush.msra.mxu0 %v60
    %183 = vmatpush.msra.mxu0 %v59
    %184 = vmatmul.f32.gmra.mxu0 %v73
    %v185 = vpop.f32.mrf.mxu0
    %v186 = vadd.f32 %v69, %v185
    %187 = vmatmul.f32.gmra.mxu0 %v76
    %v188 = vpop.f32.mrf.mxu0
    %v189 = vadd.f32 %v69, %v188
    %190 = vmatmul.f32.gmra.mxu0 %v79
    %v191 = vpop.f32.mrf.mxu0
    %v192 = vadd.f32 %v69, %v191
    %193 = vmatmul.f32.gmra.mxu0 %v82
    %v194 = vpop.f32.mrf.mxu0
    %v195 = vadd.f32 %v69, %v194
    %196 = vmatmul.f32.gmra.mxu0 %v85
    %v197 = vpop.f32.mrf.mxu0
    %v198 = vadd.f32 %v69, %v197
    %199 = vmatmul.f32.gmra.mxu0 %v88
    %v200 = vpop.f32.mrf.mxu0
    %v201 = vadd.f32 %v69, %v200
    %202 = vmatmul.f32.gmra.mxu0 %v91
    %v203 = vpop.f32.mrf.mxu0
    %v204 = vadd.f32 %v69, %v203
    %205 = vmatmul.f32.gmra.mxu0 %v94
    %v206 = vpop.f32.mrf.mxu0
    %v207 = vadd.f32 %v69, %v206
    %208 = vmatmul.f32.gmra.mxu0 %v97
    %v209 = vpop.f32.mrf.mxu0
    %v210 = vadd.f32 %v69, %v209
    %211 = vmatmul.f32.gmra.mxu0 %v100
    %v212 = vpop.f32.mrf.mxu0
    %v213 = vadd.f32 %v69, %v212
    %214 = vmatmul.f32.gmra.mxu0 %v103
    %v215 = vpop.f32.mrf.mxu0
    %v216 = vadd.f32 %v69, %v215
    %217 = vmatmul.f32.gmra.mxu0 %v106
    %v218 = vpop.f32.mrf.mxu0
    %v219 = vadd.f32 %v69, %v218
    %220 = vmatmul.f32.gmra.mxu0 %v109
    %v221 = vpop.f32.mrf.mxu0
    %v222 = vadd.f32 %v69, %v221
    %223 = vmatmul.f32.gmra.mxu0 %v112
    %v224 = vpop.f32.mrf.mxu0
    %v225 = vadd.f32 %v69, %v224
    %226 = vmatmul.f32.gmra.mxu0 %v115
    %v227 = vpop.f32.mrf.mxu0
    %v228 = vadd.f32 %v69, %v227
    %229 = vmatmul.f32.gmra.mxu0 %v118
    %v230 = vpop.f32.mrf.mxu0
    %v231 = vadd.f32 %v69, %v230
    %232 = vmatmul.f32.gmra.mxu0 %v121
    %v233 = vpop.f32.mrf.mxu0
    %v234 = vadd.f32 %v69, %v233
    %235 = vmatmul.f32.gmra.mxu0 %v124
    %v236 = vpop.f32.mrf.mxu0
    %v237 = vadd.f32 %v69, %v236
    %238 = vmatmul.f32.gmra.mxu0 %v127
    %v239 = vpop.f32.mrf.mxu0
    %v240 = vadd.f32 %v69, %v239
    %241 = vmatmul.f32.gmra.mxu0 %v130
    %v242 = vpop.f32.mrf.mxu0
    %v243 = vadd.f32 %v69, %v242
    %244 = vmatmul.f32.gmra.mxu0 %v133
    %v245 = vpop.f32.mrf.mxu0
    %v246 = vadd.f32 %v69, %v245
    %247 = vmatmul.f32.gmra.mxu0 %v136
    %v248 = vpop.f32.mrf.mxu0
    %v249 = vadd.f32 %v69, %v248
    %250 = vmatmul.f32.gmra.mxu0 %v139
    %v251 = vpop.f32.mrf.mxu0
    %v252 = vadd.f32 %v69, %v251
    %253 = vmatmul.f32.gmra.mxu0 %v142
    %v254 = vpop.f32.mrf.mxu0
    %v255 = vadd.f32 %v69, %v254
    %256 = vmatmul.f32.gmra.mxu0 %v145
    %v257 = vpop.f32.mrf.mxu0
    %v258 = vadd.f32 %v69, %v257
    %259 = vmatmul.f32.gmra.mxu0 %v148
    %v260 = vpop.f32.mrf.mxu0
    %v261 = vadd.f32 %v69, %v260
    %262 = vmatmul.f32.gmra.mxu0 %v151
    %v263 = vpop.f32.mrf.mxu0
    %v264 = vadd.f32 %v69, %v263
    %265 = vmatmul.f32.gmra.mxu0 %v154
    %v266 = vpop.f32.mrf.mxu0
    %v267 = vadd.f32 %v69, %v266
    %268 = vmatmul.f32.gmra.mxu0 %v157
    %v269 = vpop.f32.mrf.mxu0
    %v270 = vadd.f32 %v69, %v269
    %271 = vmatmul.f32.gmra.mxu0 %v160
    %v272 = vpop.f32.mrf.mxu0
    %v273 = vadd.f32 %v69, %v272
    %274 = vmatmul.f32.gmra.mxu0 %v163
    %v275 = vpop.f32.mrf.mxu0
    %v276 = vadd.f32 %v69, %v275
    %277 = vmatmul.f32.gmra.mxu0 %v166
    %v278 = vpop.f32.mrf.mxu0
    %v279 = vadd.f32 %v69, %v278
    %280 = vdwg.mxu0
    %v281 = vmax.f32 %v186, 0.0
    %v282 = vmax.f32 %v189, 0.0
    %v283 = vmax.f32 %v192, 0.0
    %v284 = vmax.f32 %v195, 0.0
    %v285 = vmax.f32 %v198, 0.0
    %v286 = vmax.f32 %v201, 0.0
    %v287 = vmax.f32 %v204, 0.0
    %v288 = vmax.f32 %v207, 0.0
    %v289 = vmax.f32 %v210, 0.0
    %v290 = vmax.f32 %v213, 0.0
    %v291 = vmax.f32 %v216, 0.0
    %v292 = vmax.f32 %v219, 0.0
    %v293 = vmax.f32 %v222, 0.0
    %v294 = vmax.f32 %v225, 0.0
    %v295 = vmax.f32 %v228, 0.0
    %v296 = vmax.f32 %v231, 0.0
    %v297 = vmax.f32 %v234, 0.0
    %v298 = vmax.f32 %v237, 0.0
    %v299 = vmax.f32 %v240, 0.0
    %v300 = vmax.f32 %v243, 0.0
    %v301 = vmax.f32 %v246, 0.0
    %v302 = vmax.f32 %v249, 0.0
    %v303 = vmax.f32 %v252, 0.0
    %v304 = vmax.f32 %v255, 0.0
    %v305 = vmax.f32 %v258, 0.0
    %v306 = vmax.f32 %v261, 0.0
    %v307 = vmax.f32 %v264, 0.0
    %v308 = vmax.f32 %v267, 0.0
    %v309 = vmax.f32 %v270, 0.0
    %v310 = vmax.f32 %v273, 0.0
    %v311 = vmax.f32 %v276, 0.0
    %v312 = vmax.f32 %v279, 0.0
    %v313 = vld [vmem:[%s3] sm:$0xff]
    %v314 = vld [vmem:[%s3 + $0x8] sm:$0xff]
    %v315 = vld [vmem:[%s3 + $0x10] sm:$0xff]
    %v316 = vld [vmem:[%s3 + $0x18] sm:$0xff]
    %v317 = vld [vmem:[%s3 + $0x20] sm:$0xff]
    %v318 = vld [vmem:[%s3 + $0x28] sm:$0xff]
    %v319 = vld [vmem:[%s3 + $0x30] sm:$0xff]
    %v320 = vld [vmem:[%s3 + $0x38] sm:$0xff]
    %v321 = vld [vmem:[%s3 + $0x40] sm:$0xff]
    %v322 = vld [vmem:[%s3 + $0x48] sm:$0xff]
    %v323 = vld [vmem:[%s3 + $0x50] sm:$0xff]
    %v324 = vld [vmem:[%s3 + $0x58] sm:$0xff]
    %v325 = vld [vmem:[%s3 + $0x60] sm:$0xff]
    %v326 = vld [vmem:[%s3 + $0x68] sm:$0xff]
    %v327 = vld [vmem:[%s3 + $0x70] sm:$0xff]
    %v328 = vld [vmem:[%s3 + $0x78] sm:$0xff]
    %v329 = vld [vmem:[%s4] sm:$0x1]
    %v331 = vperm.slane %v329, 0
    %333 = vmatpush.msra.mxu0 %v328
    %334 = vmatpush.msra.mxu0 %v327
    %335 = vmatpush.msra.mxu0 %v326
    %336 = vmatpush.msra.mxu0 %v325
    %337 = vmatpush.msra.mxu0 %v324
    %338 = vmatpush.msra.mxu0 %v323
    %339 = vmatpush.msra.mxu0 %v322
    %340 = vmatpush.msra.mxu0 %v321
    %341 = vmatpush.msra.mxu0 %v320
    %342 = vmatpush.msra.mxu0 %v319
    %343 = vmatpush.msra.mxu0 %v318
    %344 = vmatpush.msra.mxu0 %v317
    %345 = vmatpush.msra.mxu0 %v316
    %346 = vmatpush.msra.mxu0 %v315
    %347 = vmatpush.msra.mxu0 %v314
    %348 = vmatpush.msra.mxu0 %v313
    %349 = vmatmul.f32.gmra.mxu0 %v281
    %v350 = vpop.f32.mrf.mxu0
    %v351 = vadd.f32 %v331, %v350
    %352 = vmatmul.f32.gmra.mxu0 %v282
    %v353 = vpop.f32.mrf.mxu0
    %v354 = vadd.f32 %v331, %v353
    %355 = vmatmul.f32.gmra.mxu0 %v283
    %v356 = vpop.f32.mrf.mxu0
    %v357 = vadd.f32 %v331, %v356
    %358 = vmatmul.f32.gmra.mxu0 %v284
    %v359 = vpop.f32.mrf.mxu0
    %v360 = vadd.f32 %v331, %v359
    %361 = vmatmul.f32.gmra.mxu0 %v285
    %v362 = vpop.f32.mrf.mxu0
    %v363 = vadd.f32 %v331, %v362
    %364 = vmatmul.f32.gmra.mxu0 %v286
    %v365 = vpop.f32.mrf.mxu0
    %v366 = vadd.f32 %v331, %v365
    %367 = vmatmul.f32.gmra.mxu0 %v287
    %v368 = vpop.f32.mrf.mxu0
    %v369 = vadd.f32 %v331, %v368
    %370 = vmatmul.f32.gmra.mxu0 %v288
    %v371 = vpop.f32.mrf.mxu0
    %v372 = vadd.f32 %v331, %v371
    %373 = vmatmul.f32.gmra.mxu0 %v289
    %v374 = vpop.f32.mrf.mxu0
    %v375 = vadd.f32 %v331, %v374
    %376 = vmatmul.f32.gmra.mxu0 %v290
    %v377 = vpop.f32.mrf.mxu0
    %v378 = vadd.f32 %v331, %v377
    %379 = vmatmul.f32.gmra.mxu0 %v291
    %v380 = vpop.f32.mrf.mxu0
    %v381 = vadd.f32 %v331, %v380
    %382 = vmatmul.f32.gmra.mxu0 %v292
    %v383 = vpop.f32.mrf.mxu0
    %v384 = vadd.f32 %v331, %v383
    %385 = vmatmul.f32.gmra.mxu0 %v293
    %v386 = vpop.f32.mrf.mxu0
    %v387 = vadd.f32 %v331, %v386
    %388 = vmatmul.f32.gmra.mxu0 %v294
    %v389 = vpop.f32.mrf.mxu0
    %v390 = vadd.f32 %v331, %v389
    %391 = vmatmul.f32.gmra.mxu0 %v295
    %v392 = vpop.f32.mrf.mxu0
    %v393 = vadd.f32 %v331, %v392
    %394 = vmatmul.f32.gmra.mxu0 %v296
    %v395 = vpop.f32.mrf.mxu0
    %v396 = vadd.f32 %v331, %v395
    %397 = vmatmul.f32.gmra.mxu0 %v297
    %v398 = vpop.f32.mrf.mxu0
    %v399 = vadd.f32 %v331, %v398
    %400 = vmatmul.f32.gmra.mxu0 %v298
    %v401 = vpop.f32.mrf.mxu0
    %v402 = vadd.f32 %v331, %v401
    %403 = vmatmul.f32.gmra.mxu0 %v299
    %v404 = vpop.f32.mrf.mxu0
    %v405 = vadd.f32 %v331, %v404
    %406 = vmatmul.f32.gmra.mxu0 %v300
    %v407 = vpop.f32.mrf.mxu0
    %v408 = vadd.f32 %v331, %v407
    %409 = vmatmul.f32.gmra.mxu0 %v301
    %v410 = vpop.f32.mrf.mxu0
    %v411 = vadd.f32 %v331, %v410
    %412 = vmatmul.f32.gmra.mxu0 %v302
    %v413 = vpop.f32.mrf.mxu0
    %v414 = vadd.f32 %v331, %v413
    %415 = vmatmul.f32.gmra.mxu0 %v303
    %v416 = vpop.f32.mrf.mxu0
    %v417 = vadd.f32 %v331, %v416
    %418 = vmatmul.f32.gmra.mxu0 %v304
    %v419 = vpop.f32.mrf.mxu0
    %v420 = vadd.f32 %v331, %v419
    %421 = vmatmul.f32.gmra.mxu0 %v305
    %v422 = vpop.f32.mrf.mxu0
    %v423 = vadd.f32 %v331, %v422
    %424 = vmatmul.f32.gmra.mxu0 %v306
    %v425 = vpop.f32.mrf.mxu0
    %v426 = vadd.f32 %v331, %v425
    %427 = vmatmul.f32.gmra.mxu0 %v307
    %v428 = vpop.f32.mrf.mxu0
    %v429 = vadd.f32 %v331, %v428
    %430 = vmatmul.f32.gmra.mxu0 %v308
    %v431 = vpop.f32.mrf.mxu0
    %v432 = vadd.f32 %v331, %v431
    %433 = vmatmul.f32.gmra.mxu0 %v309
    %v434 = vpop.f32.mrf.mxu0
    %v435 = vadd.f32 %v331, %v434
    %436 = vmatmul.f32.gmra.mxu0 %v310
    %v437 = vpop.f32.mrf.mxu0
    %v438 = vadd.f32 %v331, %v437
    %439 = vmatmul.f32.gmra.mxu0 %v311
    %v440 = vpop.f32.mrf.mxu0
    %v441 = vadd.f32 %v331, %v440
    %442 = vmatmul.f32.gmra.mxu0 %v312
    %v443 = vpop.f32.mrf.mxu0
    %v444 = vadd.f32 %v331, %v443
    %445 = vdwg.mxu0
    %v446 = vmax.f32 %v351, 0.0
    %v447 = vmax.f32 %v354, 0.0
    %v448 = vmax.f32 %v357, 0.0
    %v449 = vmax.f32 %v360, 0.0
    %v450 = vmax.f32 %v363, 0.0
    %v451 = vmax.f32 %v366, 0.0
    %v452 = vmax.f32 %v369, 0.0
    %v453 = vmax.f32 %v372, 0.0
    %v454 = vmax.f32 %v375, 0.0
    %v455 = vmax.f32 %v378, 0.0
    %v456 = vmax.f32 %v381, 0.0
    %v457 = vmax.f32 %v384, 0.0
    %v458 = vmax.f32 %v387, 0.0
    %v459 = vmax.f32 %v390, 0.0
    %v460 = vmax.f32 %v393, 0.0
    %v461 = vmax.f32 %v396, 0.0
    %v462 = vmax.f32 %v399, 0.0
    %v463 = vmax.f32 %v402, 0.0
    %v464 = vmax.f32 %v405, 0.0
    %v465 = vmax.f32 %v408, 0.0
    %v466 = vmax.f32 %v411, 0.0
    %v467 = vmax.f32 %v414, 0.0
    %v468 = vmax.f32 %v417, 0.0
    %v469 = vmax.f32 %v420, 0.0
    %v470 = vmax.f32 %v423, 0.0
    %v471 = vmax.f32 %v426, 0.0
    %v472 = vmax.f32 %v429, 0.0
    %v473 = vmax.f32 %v432, 0.0
    %v474 = vmax.f32 %v435, 0.0
    %v475 = vmax.f32 %v438, 0.0
    %v476 = vmax.f32 %v441, 0.0
    %v477 = vmax.f32 %v444, 0.0
    %v478 = vld [vmem:[%s5] sm:$0xff]
    %v479 = vld [vmem:[%s5 + $0x8] sm:$0xff]
    %v480 = vld [vmem:[%s5 + $0x10] sm:$0xff]
    %v481 = vld [vmem:[%s5 + $0x18] sm:$0xff]
    %v482 = vld [vmem:[%s5 + $0x20] sm:$0xff]
    %v483 = vld [vmem:[%s5 + $0x28] sm:$0xff]
    %v484 = vld [vmem:[%s5 + $0x30] sm:$0xff]
    %v485 = vld [vmem:[%s5 + $0x38] sm:$0xff]
    %v486 = vld [vmem:[%s5 + $0x40] sm:$0xff]
    %v487 = vld [vmem:[%s5 + $0x48] sm:$0xff]
    %v488 = vld [vmem:[%s5 + $0x50] sm:$0xff]
    %v489 = vld [vmem:[%s5 + $0x58] sm:$0xff]
    %v490 = vld [vmem:[%s5 + $0x60] sm:$0xff]
    %v491 = vld [vmem:[%s5 + $0x68] sm:$0xff]
    %v492 = vld [vmem:[%s5 + $0x70] sm:$0xff]
    %v493 = vld [vmem:[%s5 + $0x78] sm:$0xff]
    %v494 = vld [vmem:[%s6] sm:$0x1]
    %v496 = vperm.slane %v494, 0
    %498 = vmatpush.msra.mxu0 %v493
    %499 = vmatpush.msra.mxu0 %v492
    %500 = vmatpush.msra.mxu0 %v491
    %501 = vmatpush.msra.mxu0 %v490
    %502 = vmatpush.msra.mxu0 %v489
    %503 = vmatpush.msra.mxu0 %v488
    %504 = vmatpush.msra.mxu0 %v487
    %505 = vmatpush.msra.mxu0 %v486
    %506 = vmatpush.msra.mxu0 %v485
    %507 = vmatpush.msra.mxu0 %v484
    %508 = vmatpush.msra.mxu0 %v483
    %509 = vmatpush.msra.mxu0 %v482
    %510 = vmatpush.msra.mxu0 %v481
    %511 = vmatpush.msra.mxu0 %v480
    %512 = vmatpush.msra.mxu0 %v479
    %513 = vmatpush.msra.mxu0 %v478
    %514 = vmatmul.f32.gmra.mxu0 %v446
    %v515 = vpop.f32.mrf.mxu0
    %v516 = vadd.f32 %v496, %v515
    %517 = vmatmul.f32.gmra.mxu0 %v447
    %v518 = vpop.f32.mrf.mxu0
    %v519 = vadd.f32 %v496, %v518
    %520 = vmatmul.f32.gmra.mxu0 %v448
    %v521 = vpop.f32.mrf.mxu0
    %v522 = vadd.f32 %v496, %v521
    %523 = vmatmul.f32.gmra.mxu0 %v449
    %v524 = vpop.f32.mrf.mxu0
    %v525 = vadd.f32 %v496, %v524
    %526 = vmatmul.f32.gmra.mxu0 %v450
    %v527 = vpop.f32.mrf.mxu0
    %v528 = vadd.f32 %v496, %v527
    %529 = vmatmul.f32.gmra.mxu0 %v451
    %v530 = vpop.f32.mrf.mxu0
    %v531 = vadd.f32 %v496, %v530
    %532 = vmatmul.f32.gmra.mxu0 %v452
    %v533 = vpop.f32.mrf.mxu0
    %v534 = vadd.f32 %v496, %v533
    %535 = vmatmul.f32.gmra.mxu0 %v453
    %v536 = vpop.f32.mrf.mxu0
    %v537 = vadd.f32 %v496, %v536
    %538 = vmatmul.f32.gmra.mxu0 %v454
    %v539 = vpop.f32.mrf.mxu0
    %v540 = vadd.f32 %v496, %v539
    %541 = vmatmul.f32.gmra.mxu0 %v455
    %v542 = vpop.f32.mrf.mxu0
    %v543 = vadd.f32 %v496, %v542
    %544 = vmatmul.f32.gmra.mxu0 %v456
    %v545 = vpop.f32.mrf.mxu0
    %v546 = vadd.f32 %v496, %v545
    %547 = vmatmul.f32.gmra.mxu0 %v457
    %v548 = vpop.f32.mrf.mxu0
    %v549 = vadd.f32 %v496, %v548
    %550 = vmatmul.f32.gmra.mxu0 %v458
    %v551 = vpop.f32.mrf.mxu0
    %v552 = vadd.f32 %v496, %v551
    %553 = vmatmul.f32.gmra.mxu0 %v459
    %v554 = vpop.f32.mrf.mxu0
    %v555 = vadd.f32 %v496, %v554
    %556 = vmatmul.f32.gmra.mxu0 %v460
    %v557 = vpop.f32.mrf.mxu0
    %v558 = vadd.f32 %v496, %v557
    %559 = vmatmul.f32.gmra.mxu0 %v461
    %v560 = vpop.f32.mrf.mxu0
    %v561 = vadd.f32 %v496, %v560
    %562 = vmatmul.f32.gmra.mxu0 %v462
    %v563 = vpop.f32.mrf.mxu0
    %v564 = vadd.f32 %v496, %v563
    %565 = vmatmul.f32.gmra.mxu0 %v463
    %v566 = vpop.f32.mrf.mxu0
    %v567 = vadd.f32 %v496, %v566
    %568 = vmatmul.f32.gmra.mxu0 %v464
    %v569 = vpop.f32.mrf.mxu0
    %v570 = vadd.f32 %v496, %v569
    %571 = vmatmul.f32.gmra.mxu0 %v465
    %v572 = vpop.f32.mrf.mxu0
    %v573 = vadd.f32 %v496, %v572
    %574 = vmatmul.f32.gmra.mxu0 %v466
    %v575 = vpop.f32.mrf.mxu0
    %v576 = vadd.f32 %v496, %v575
    %577 = vmatmul.f32.gmra.mxu0 %v467
    %v578 = vpop.f32.mrf.mxu0
    %v579 = vadd.f32 %v496, %v578
    %580 = vmatmul.f32.gmra.mxu0 %v468
    %v581 = vpop.f32.mrf.mxu0
    %v582 = vadd.f32 %v496, %v581
    %583 = vmatmul.f32.gmra.mxu0 %v469
    %v584 = vpop.f32.mrf.mxu0
    %v585 = vadd.f32 %v496, %v584
    %586 = vmatmul.f32.gmra.mxu0 %v470
    %v587 = vpop.f32.mrf.mxu0
    %v588 = vadd.f32 %v496, %v587
    %589 = vmatmul.f32.gmra.mxu0 %v471
    %v590 = vpop.f32.mrf.mxu0
    %v591 = vadd.f32 %v496, %v590
    %592 = vmatmul.f32.gmra.mxu0 %v472
    %v593 = vpop.f32.mrf.mxu0
    %v594 = vadd.f32 %v496, %v593
    %595 = vmatmul.f32.gmra.mxu0 %v473
    %v596 = vpop.f32.mrf.mxu0
    %v597 = vadd.f32 %v496, %v596
    %598 = vmatmul.f32.gmra.mxu0 %v474
    %v599 = vpop.f32.mrf.mxu0
    %v600 = vadd.f32 %v496, %v599
    %601 = vmatmul.f32.gmra.mxu0 %v475
    %v602 = vpop.f32.mrf.mxu0
    %v603 = vadd.f32 %v496, %v602
    %604 = vmatmul.f32.gmra.mxu0 %v476
    %v605 = vpop.f32.mrf.mxu0
    %v606 = vadd.f32 %v496, %v605
    %607 = vmatmul.f32.gmra.mxu0 %v477
    %v608 = vpop.f32.mrf.mxu0
    %v609 = vadd.f32 %v496, %v608
    %610 = vdwg.mxu0
    %611 = vst [vmem:[#allocation2] sm:$0xff] %v516
    %612 = vst [vmem:[#allocation2 + $0x8] sm:$0xff] %v519
    %613 = vst [vmem:[#allocation2 + $0x10] sm:$0xff] %v522
    %614 = vst [vmem:[#allocation2 + $0x18] sm:$0xff] %v525
    %615 = vst [vmem:[#allocation2 + $0x20] sm:$0xff] %v528
    %616 = vst [vmem:[#allocation2 + $0x28] sm:$0xff] %v531
    %617 = vst [vmem:[#allocation2 + $0x30] sm:$0xff] %v534
    %618 = vst [vmem:[#allocation2 + $0x38] sm:$0xff] %v537
    %619 = vst [vmem:[#allocation2 + $0x40] sm:$0xff] %v540
    %620 = vst [vmem:[#allocation2 + $0x48] sm:$0xff] %v543
    %621 = vst [vmem:[#allocation2 + $0x50] sm:$0xff] %v546
    %622 = vst [vmem:[#allocation2 + $0x58] sm:$0xff] %v549
    %623 = vst [vmem:[#allocation2 + $0x60] sm:$0xff] %v552
    %624 = vst [vmem:[#allocation2 + $0x68] sm:$0xff] %v555
    %625 = vst [vmem:[#allocation2 + $0x70] sm:$0xff] %v558
    %626 = vst [vmem:[#allocation2 + $0x78] sm:$0xff] %v561
    %627 = vst [vmem:[#allocation2 + $0x80] sm:$0xff] %v564
    %628 = vst [vmem:[#allocation2 + $0x88] sm:$0xff] %v567
    %629 = vst [vmem:[#allocation2 + $0x90] sm:$0xff] %v570
    %630 = vst [vmem:[#allocation2 + $0x98] sm:$0xff] %v573
    %631 = vst [vmem:[#allocation2 + $0xa0] sm:$0xff] %v576
    %632 = vst [vmem:[#allocation2 + $0xa8] sm:$0xff] %v579
    %633 = vst [vmem:[#allocation2 + $0xb0] sm:$0xff] %v582
    %634 = vst [vmem:[#allocation2 + $0xb8] sm:$0xff] %v585
    %635 = vst [vmem:[#allocation2 + $0xc0] sm:$0xff] %v588
    %636 = vst [vmem:[#allocation2 + $0xc8] sm:$0xff] %v591
    %637 = vst [vmem:[#allocation2 + $0xd0] sm:$0xff] %v594
    %638 = vst [vmem:[#allocation2 + $0xd8] sm:$0xff] %v597
    %639 = vst [vmem:[#allocation2 + $0xe0] sm:$0xff] %v600
    %640 = vst [vmem:[#allocation2 + $0xe8] sm:$0xff] %v603
    %641 = vst [vmem:[#allocation2 + $0xf0] sm:$0xff] %v606
    %642 = vst [vmem:[#allocation2 + $0xf8] sm:$0xff] %v609
    // Predicated region
    $region30: #{tpu_custom_call.1} parent=1 // pred_check
      _
    $region31: #{tpu_custom_call.1} parent=1 // pred_check_branch
      %644 = sbr.rel (0) target = $region33
    $region32: #{tpu_custom_call.1} parent=1 // pred_region
      %646 = vsyncadd [#allocation3], 0
      %s647 = sshll.u32 [#allocation2], 4
      %s648 = int_to_ptr.vmem [resolvable:$true] %s647
      %s649 = sshll.u32 %s7, 4
      %s650 = int_to_ptr.hbm [resolvable:$true] %s649
      %655 = dma.vmem_to_hbm [thread:$0]  %s648, 4096, %s650, [#allocation3], 128, 128, 8
    $region33: #{tpu_custom_call.1} parent=1 // pred_fallthru
      _
    // Predicated region
    $region34: #{tpu_custom_call.1} parent=1 // pred_check
      _
    $region35: #{tpu_custom_call.1} parent=1 // pred_check_branch
      %657 = sbr.rel (0) target = $region37
    $region36: #{tpu_custom_call.1} parent=1 // pred_region
      %659 = dma.done [#allocation3], 4096
    $region37: #{tpu_custom_call.1} parent=1 // pred_fallthru
      _
    %660 = vsyncpa [#allocation3], 1

</llo_original>
